<compile_context>
chip_gen: v5e
topology: v5e:2x2
jax: 0.10.0
libtpu: 0.0.40
codegen_flags: <defaults>
</compile_context>

<pallas_src>
import jax
import jax.numpy as jnp
from jax.experimental import pallas as pl
from jax.experimental.pallas import tpu as pltpu

TRUNC_NORM_INIT_STD = 1e-4   # config.trunc_norm_init_std

_ONEHOT_MAX_VOCAB = 4096     # beyond this the one-hot matmul wastes MXU flops
_GATHER_SLOTS = 8            # in-flight row DMAs for the HBM-gather path


def _round_up(x, m):
    return pl.cdiv(x, m) * m


def _vmem_capacity_bytes():
    """Per-core VMEM capacity; conservative fallback if the query is unavailable."""
    try:
        return int(pltpu.get_tpu_info().vmem_capacity_bytes)
    except Exception:
        return 64 * 1024 * 1024          # v7x per-TC VMEM (smallest current part)


def _embed_onehot_kernel(ids_ref, w_ref, out_ref):
    """Small-vocab gather expressed as a one-hot MXU matmul.

    ids_ref: (1, T)  int32 token ids for this tile (VMEM, lane-major)
    w_ref:   (V, D)  whole embedding table, VMEM-resident (single-buffered)
    out_ref: (T, D)  lane/sublane-dense output tile
    """
    V = w_ref.shape[0]
    T = out_ref.shape[0]
    # Clamp so a bad/OOB token id can never index past the table.
    ids = jnp.clip(ids_ref[...], 0, V - 1)                        # (1, T)
    # one_hot[v, t] = (v == ids[t]); ids broadcast along the sublane (V) dim,
    # so no cross-lane transpose of the id vector is needed.
    onehot = (jax.lax.broadcasted_iota(jnp.int32, (V, T), 0) == ids).astype(
        w_ref.dtype
    )
    # out[t, d] = sum_v onehot[v, t] * w[v, d]  ==  w[ids[t], d]
    out_ref[...] = jax.lax.dot_general(
        onehot,
        w_ref[...],
        dimension_numbers=(((0,), (0,)), ((), ())),
        preferred_element_type=jnp.float32,
        precision=jax.lax.Precision.HIGHEST,    # keep the gather bit-exact in f32
    ).astype(out_ref.dtype)


def _embed_hbm_gather_kernel(ids_ref, w_hbm, out_ref, sems):
    """Large-vocab path: per-token row DMAs straight from the HBM-resident table.

    ids_ref: (Np,)  int32 token ids, scalar-prefetched into SMEM
    w_hbm:   (V, D) embedding table left in HBM (memory_space=pl.ANY)
    out_ref: (T, D) VMEM output tile; gathered rows are DMA'd into it directly
    sems:    (_GATHER_SLOTS,) DMA semaphores -> up to 8 row copies in flight
    """
    T = out_ref.shape[0]
    V = w_hbm.shape[0]
    base = pl.program_id(0) * T

    def issue(t):
        row = jnp.clip(ids_ref[base + t], 0, V - 1)
        pltpu.make_async_copy(
            w_hbm.at[pl.ds(row, 1), :],
            out_ref.at[pl.ds(t, 1), :],
            sems.at[t % _GATHER_SLOTS],
        ).start()

    def wait(t):
        pltpu.make_async_copy(
            w_hbm.at[pl.ds(0, 1), :],
            out_ref.at[pl.ds(t, 1), :],
            sems.at[t % _GATHER_SLOTS],
        ).wait()

    # Prime the DMA window, then retire one row / issue one row per step.
    for s in range(min(_GATHER_SLOTS, T)):
        issue(s)

    def body(t, carry):
        wait(t)

        @pl.when(t + _GATHER_SLOTS < T)
        def _():
            issue(t + _GATHER_SLOTS)

        return carry

    jax.lax.fori_loop(0, T, body, 0)


def embedding_forward(input_seqs, weight):
    """Pallas equivalent of `nn.Embedding(input_size, embedding_dim)(input_seqs)`.

    input_seqs: int32 (B, S)
    weight:     float32 (input_size, embedding_dim)
    returns:    float32 (B, S, embedding_dim)
    """
    B, S = input_seqs.shape
    V, D = weight.shape
    itemsize = jnp.dtype(weight.dtype).itemsize

    ids = input_seqs.reshape(-1).astype(jnp.int32)       # (N,)
    N = ids.shape[0]

    # Generation-aware VMEM budget (v5e/v6e: 128 MiB, v7x: 64 MiB per TC),
    # with ~18% headroom for compiler-internal scratch.
    vmem_cap = int(_vmem_capacity_bytes() * 0.82)

    use_onehot = V <= _ONEHOT_MAX_VOCAB

    # Token tile: target ~2 MiB output tiles so the ~0.35 us per-grid-step
    # pipeline overhead is negligible against the HBM writeback.
    T = max(128, min(4096, ((2 << 20) // (D * itemsize)) // 128 * 128))
    if use_onehot:
        # Keep the (V, T) one-hot matmul operand under ~4 MiB of VMEM.
        T = min(T, max(128, ((4 << 20) // (_round_up(V, 8) * 4)) // 128 * 128))
    if N <= 128:
        T = N                 # single block == full array dims, no padding at all
    else:
        T = min(T, _round_up(N, 128))
    num_tiles = pl.cdiv(N, T)
    Np = num_tiles * T

    # Only the (cheap, int32) ids are padded. The output stays (N, D): the final
    # partial output tile is masked by Pallas, so there is no post-kernel slice
    # (which would cost an extra read+write pass over the output).
    ids_p = jnp.pad(ids, (0, Np - N)) if Np != N else ids

    table_bytes = V * D * itemsize
    onehot_bytes = _round_up(V, 8) * T * 4 if use_onehot else 0
    tile_bytes = 2 * T * D * itemsize + 2 * 8 * T * 4 + onehot_bytes
    resident = use_onehot and (table_bytes + tile_bytes + (4 << 20) <= vmem_cap)
    out_bytes = N * D * itemsize

    if resident:
        # TODO(synk): optional bf16 table (halves resident VMEM + table DMA) when
        # downstream consumers tolerate bf16; kept f32 here for bit-exactness.
        cost = pl.CostEstimate(
            flops=2 * Np * V * D,
            transcendentals=0,
            bytes_accessed=int(table_bytes + Np * 4 + out_bytes),
        )
        vmem_limit = int(
            min(max(table_bytes + tile_bytes + (4 << 20), 16 << 20), vmem_cap)
        )
        out_flat = pl.pallas_call(
            _embed_onehot_kernel,
            out_shape=jax.ShapeDtypeStruct((N, D), weight.dtype),
            grid=(num_tiles,),
            in_specs=[
                # Token-id tile for this grid step (lane-major, pipelined).
                pl.BlockSpec((1, T), lambda i: (0, i)),
                # Whole table, VMEM-resident and SINGLE-buffered: copied from HBM
                # exactly once, no second pipeline buffer (halves its footprint).
                pl.BlockSpec(memory_space=pltpu.MemorySpace.VMEM),
            ],
            out_specs=pl.BlockSpec((T, D), lambda i: (i, 0)),
            compiler_params=pltpu.CompilerParams(
                # TODO(synk): pltpu.CORE_PARALLEL on v7x (2 TCs/chip) once the
                # per-TC table replication is validated against 64 MiB/TC.
                dimension_semantics=("parallel",),
                vmem_limit_bytes=vmem_limit,
            ),
            cost_estimate=cost,
        )(ids_p.reshape(1, Np), weight)
    else:
        # Large/realistic vocab: table never leaves HBM; ids live in SMEM and
        # drive a pipelined per-row DMA gather directly into the output tile.
        cost = pl.CostEstimate(
            flops=0,
            transcendentals=0,
            bytes_accessed=int(2 * out_bytes + Np * 4),
        )
        out_flat = pl.pallas_call(
            _embed_hbm_gather_kernel,
            out_shape=jax.ShapeDtypeStruct((N, D), weight.dtype),
            grid_spec=pltpu.PrefetchScalarGridSpec(
                num_scalar_prefetch=1,                         # ids -> SMEM
                grid=(num_tiles,),
                in_specs=[pl.BlockSpec(memory_space=pl.ANY)],  # table stays in HBM
                out_specs=pl.BlockSpec((T, D), lambda i, ids: (i, 0)),
                scratch_shapes=[pltpu.SemaphoreType.DMA((_GATHER_SLOTS,))],
            ),
            compiler_params=pltpu.CompilerParams(
                dimension_semantics=("arbitrary",),
                vmem_limit_bytes=int(min(32 << 20, vmem_cap)),
            ),
            cost_estimate=cost,
        )(ids_p, weight)

    return out_flat.reshape(B, S, D)


if __name__ == "__main__":
    key = jax.random.PRNGKey(0)
    k_ids, k_w = jax.random.split(key)

    # Module shapes: Embeddings(input_size, embedding_dim)
    input_size = 64        # vocab size
    embedding_dim = 128    # embedding dim (lane-aligned)
    B, S = 2, 8            # batch, sequence length

    # Deterministic init matching init_wt_normal (normal, std=trunc_norm_init_std)
    weight = (
        jax.random.normal(k_w, (input_size, embedding_dim), dtype=jnp.float32)
        * TRUNC_NORM_INIT_STD
    )
    input_seqs = jax.random.randint(
        k_ids, (B, S), minval=0, maxval=input_size, dtype=jnp.int32
    )

    out = jax.block_until_ready(embedding_forward(input_seqs, weight))

    # Reference check against plain-JAX gather (== PyTorch nn.Embedding semantics).
    ref = jnp.take(weight, input_seqs, axis=0)
    assert out.shape == (B, S, embedding_dim), out.shape
    assert out.dtype == jnp.float32
    assert jnp.allclose(out, ref, rtol=1e-6, atol=1e-9), "Pallas embedding mismatch"

    print("KERNEL_OK")
</pallas_src>

<mosaic_0001>
module attributes {stable_mosaic.version = 11 : i64} {
  func.func @_embed_onehot_kernel(%arg0: i32, %arg1: memref<1x16xi32, #tpu.memory_space<vmem>>, %arg2: memref<64x128xf32, #tpu.memory_space<vmem>>, %arg3: memref<16x128xf32, #tpu.memory_space<vmem>>) attributes {dimension_semantics = [#tpu.dimension_semantics<parallel>], iteration_bounds = array<i64: 1>, scalar_prefetch = 0 : i64, scratch_operands = 0 : i64, tpu.core_type = #tpu.core_type<tc>, window_params = [{transform_indices = @transform_0, window_bounds = array<i64: 1, 16>}, {pipeline_mode = #tpu.pipeline_mode<synchronous>, transform_indices = @transform_1, window_bounds = array<i64: 64, 128>}, {transform_indices = @transform_2, window_bounds = array<i64: 16, 128>}]} {
    %c0 = arith.constant 0 : index
    %c0_0 = arith.constant 0 : index
    %0 = vector.load %arg1[%c0, %c0_0] : memref<1x16xi32, #tpu.memory_space<vmem>>, vector<1x16xi32>
    %c0_i32 = arith.constant 0 : i32
    %c63_i32 = arith.constant 63 : i32
    %1 = vector.broadcast %c0_i32 : i32 to vector<1x16xi32>
    %2 = arith.maxsi %1, %0 : vector<1x16xi32>
    %3 = vector.broadcast %c63_i32 : i32 to vector<1x16xi32>
    %4 = arith.minsi %3, %2 : vector<1x16xi32>
    %5 = tpu.iota {dimensions = array<i32: 0>} : vector<64x16xi32>
    %6 = vector.broadcast %4 : vector<1x16xi32> to vector<64x16xi32>
    %7 = arith.cmpi eq, %5, %6 : vector<64x16xi32>
    %8 = arith.extui %7 : vector<64x16xi1> to vector<64x16xi32>
    %9 = arith.sitofp %8 : vector<64x16xi32> to vector<64x16xf32>
    %c0_1 = arith.constant 0 : index
    %c0_2 = arith.constant 0 : index
    %10 = vector.load %arg2[%c0_1, %c0_2] : memref<64x128xf32, #tpu.memory_space<vmem>>, vector<64x128xf32>
    %cst = arith.constant dense<0.000000e+00> : vector<16x128xf32>
    %11 = tpu.matmul %9, %10, %cst {dimension_numbers = #tpu.dot_dimension_numbers<[0], [0], [1], [1], [0, 1, 1, 1], [], []>, precision = #tpu.contract_precision<fp32>} : vector<64x16xf32>, vector<64x128xf32>, vector<16x128xf32> -> vector<16x128xf32>
    %c0_3 = arith.constant 0 : index
    %c0_4 = arith.constant 0 : index
    %12 = vector.load %arg3[%c0_3, %c0_4] : memref<16x128xf32, #tpu.memory_space<vmem>>, vector<16x128xf32>
    tpu.vector_store %arg3[%c0_3, %c0_4], %11 {strides = array<i32>} : memref<16x128xf32, #tpu.memory_space<vmem>>, vector<16x128xf32>,
    return
  }
  func.func @transform_0(%arg0: i32) -> (i32, i32) {
    %c0_i32 = arith.constant 0 : i32
    %c0_i32_0 = arith.constant 0 : i32
    return %c0_i32, %arg0 : i32, i32
  }
  func.func @transform_1(%arg0: i32) -> (i32, i32) {
    %c0_i32 = arith.constant 0 : i32
    %c0_i32_0 = arith.constant 0 : i32
    %c0_i32_1 = arith.constant 0 : i32
    return %c0_i32, %c0_i32_0 : i32, i32
  }
  func.func @transform_2(%arg0: i32) -> (i32, i32) {
    %c0_i32 = arith.constant 0 : i32
    %c0_i32_0 = arith.constant 0 : i32
    return %arg0, %c0_i32 : i32, i32
  }
}

</mosaic_0001>

<llo_original>
// kernel: tpu_custom_call.1
$region0: #{tpu_custom_call.1}
  #allocation0 [shape = 'u32[]', space=smem, size = 0x4, offset = 0x4, fixed_abs, tag = 'smem constant byte address 0x4 - core index']
  #allocation1 [shape = 'u32[72,128]{1,0:T(1,128)}', space=vmem, size = 0x9000, scoped, tag = 'internal scratch']
  %s0 = inlined_call_operand.hbm [shape: s32[1,16], index: 0, kind: input, shape index: {}]
  %s1 = inlined_call_operand.hbm [shape: f32[64,128], index: 1, kind: input, shape index: {}]
  %s2 = inlined_call_operand.hbm [shape: f32[16,128], index: 2, kind: output, shape index: {}]
  %s3 = sld [smem:[#allocation0]]
  $region26: #{tpu_custom_call.1} parent=0
    _
  %s5 = ssub.s32 1, %s3
  %s6 = scalar_select 0, %s5, %s3
  $region1: #{tpu_custom_call.1} parent=0
    #allocation2 [shape = 'u8[512]{0}', space=vmem, size = 0x400, scoped, tag = 'input window, operand 0, single buffered']
    #allocation3 [shape = 's32[1]{0}', space=sflag, size = 0x4, scoped, tag = 'scoped memory for tpu_custom_call.1']
    #allocation4 [shape = 's32[1]{0}', space=sflag, size = 0x4, scoped, tag = 'scoped memory for tpu_custom_call.1']
    #allocation5 [shape = 'u8[32768]{0}', space=vmem, size = 0x8000, scoped, tag = 'input window, operand 1, single buffered']
    #allocation6 [shape = 's32[1]{0}', space=sflag, size = 0x4, scoped, tag = 'scoped memory for tpu_custom_call.1']
    #allocation7 [shape = 'u8[8192]{0}', space=vmem, size = 0x2000, scoped, tag = 'output window, operand 0, single buffered']
    %7 = vsyncpa [#allocation3], 0
    %8 = vsyncpa [#allocation6], 0
    %9 = vsyncpa [#allocation4], 0
    // Predicated region
    $region2: #{tpu_custom_call.1} parent=1 // pred_check
      _
    $region3: #{tpu_custom_call.1} parent=1 // pred_check_branch
      %11 = sbr.rel (0) target = $region5
    $region4: #{tpu_custom_call.1} parent=1 // pred_region
      %13 = vsyncadd [#allocation3], 0
      %s15 = sshll.u32 %s0, 4
      %s16 = int_to_ptr.hbm [resolvable:$true] %s15
      %s17 = sshll.u32 [#allocation2], 4
      %s18 = int_to_ptr.vmem [resolvable:$true] %s17
      %20 = dma.hbm_to_vmem [thread:$0]  %s16, 16, %s18, [#allocation3]
    $region5: #{tpu_custom_call.1} parent=1 // pred_fallthru
      _
    // Predicated region
    $region6: #{tpu_custom_call.1} parent=1 // pred_check
      _
    $region7: #{tpu_custom_call.1} parent=1 // pred_check_branch
      %22 = sbr.rel (0) target = $region9
    $region8: #{tpu_custom_call.1} parent=1 // pred_region
      %24 = vsyncadd [#allocation6], 0
      %s25 = sshll.u32 %s1, 4
      %s26 = int_to_ptr.hbm [resolvable:$true] %s25
      %s27 = sshll.u32 [#allocation5], 4
      %s28 = int_to_ptr.vmem [resolvable:$true] %s27
      %33 = dma.hbm_to_vmem [thread:$0]  %s26, 1024, %s28, [#allocation6], 128, 128, 8
    $region9: #{tpu_custom_call.1} parent=1 // pred_fallthru
      _
    // Predicated region
    $region10: #{tpu_custom_call.1} parent=1 // pred_check
      _
    $region11: #{tpu_custom_call.1} parent=1 // pred_check_branch
      %35 = sbr.rel (0) target = $region13
    $region12: #{tpu_custom_call.1} parent=1 // pred_region
      %37 = dma.done [#allocation3], 16
    $region13: #{tpu_custom_call.1} parent=1 // pred_fallthru
      _
    // Predicated region
    $region14: #{tpu_custom_call.1} parent=1 // pred_check
      _
    $region15: #{tpu_custom_call.1} parent=1 // pred_check_branch
      %39 = sbr.rel (0) target = $region17
    $region16: #{tpu_custom_call.1} parent=1 // pred_region
      %41 = dma.done [#allocation6], 1024
    $region17: #{tpu_custom_call.1} parent=1 // pred_fallthru
      _
    %v42 = vld [vmem:[#allocation2] sm:$0x1]
    %vm43 = vcmp.gt.s32.totalorder %v42, 0
    %v44 = vsel %vm43, %v42, 0
    %vm45 = vcmp.lt.s32.totalorder %v44, 63
    %v46 = vsel %vm45, %v44, 63
    %v47 = vlaneseq
    %v48 = vshrl.u32 %v47, 7
    %v49 = vadd.s32 %v48, 8
    %v50 = vadd.s32 %v48, 16
    %v51 = vadd.s32 %v48, 24
    %v52 = vadd.s32 %v48, 32
    %v53 = vadd.s32 %v48, 40
    %v54 = vadd.s32 %v48, 48
    %v55 = vadd.s32 %v48, 56
    %v56 = vperm.slane %v46, 0
    %vm57 = vcmp.eq.s32.totalorder %v48, %v56
    %vm58 = vcmp.eq.s32.totalorder %v49, %v56
    %vm59 = vcmp.eq.s32.totalorder %v50, %v56
    %vm60 = vcmp.eq.s32.totalorder %v51, %v56
    %vm61 = vcmp.eq.s32.totalorder %v52, %v56
    %vm62 = vcmp.eq.s32.totalorder %v53, %v56
    %vm63 = vcmp.eq.s32.totalorder %v54, %v56
    %vm64 = vcmp.eq.s32.totalorder %v55, %v56
    %v65 = vsel %vm57, 1, 0
    %v66 = vsel %vm58, 1, 0
    %v67 = vsel %vm59, 1, 0
    %v68 = vsel %vm60, 1, 0
    %v69 = vsel %vm61, 1, 0
    %v70 = vsel %vm62, 1, 0
    %v71 = vsel %vm63, 1, 0
    %v72 = vsel %vm64, 1, 0
    %v73 = vcvt.s32.f32 %v65
    %v74 = vcvt.s32.f32 %v66
    %v75 = vcvt.s32.f32 %v67
    %v76 = vcvt.s32.f32 %v68
    %v77 = vcvt.s32.f32 %v69
    %v78 = vcvt.s32.f32 %v70
    %v79 = vcvt.s32.f32 %v71
    %v80 = vcvt.s32.f32 %v72
    %v81 = vld [vmem:[#allocation5] sm:$0xff]
    %v82 = vld [vmem:[#allocation5 + $0x8] sm:$0xff]
    %v83 = vld [vmem:[#allocation5 + $0x10] sm:$0xff]
    %v84 = vld [vmem:[#allocation5 + $0x18] sm:$0xff]
    %v85 = vld [vmem:[#allocation5 + $0x20] sm:$0xff]
    %v86 = vld [vmem:[#allocation5 + $0x28] sm:$0xff]
    %v87 = vld [vmem:[#allocation5 + $0x30] sm:$0xff]
    %v88 = vld [vmem:[#allocation5 + $0x38] sm:$0xff]
    %89 = vxpose.xlu0.b32.start [1/16] %v73, 128
    %90 = vxpose.xlu0.b32.cont [2/16] %v74, 128
    %91 = vxpose.xlu0.b32.cont [3/16] %v75, 128
    %92 = vxpose.xlu0.b32.cont [4/16] %v76, 128
    %93 = vxpose.xlu0.b32.cont [5/16] %v77, 128
    %94 = vxpose.xlu0.b32.cont [6/16] %v78, 128
    %95 = vxpose.xlu0.b32.cont [7/16] %v79, 128
    %96 = vxpose.xlu0.b32.cont [8/16] %v80, 128
    %97 = vxpose.xlu0.b32.cont [9/16] 0.0, 128
    %98 = vxpose.xlu0.b32.cont [10/16] 0.0, 128
    %99 = vxpose.xlu0.b32.cont [11/16] 0.0, 128
    %100 = vxpose.xlu0.b32.cont [12/16] 0.0, 128
    %101 = vxpose.xlu0.b32.cont [13/16] 0.0, 128
    %102 = vxpose.xlu0.b32.cont [14/16] 0.0, 128
    %103 = vxpose.xlu0.b32.cont [15/16] 0.0, 128
    %104 = vxpose.xlu0.b32.end [16/16] 0.0, 128
    %v105 = vpop.trf.xlu0
    %v106 = vpop.trf.xlu0
    %v107 = vpop.trf.xlu0
    %v108 = vpop.trf.xlu0
    %v109 = vpop.trf.xlu0
    %v110 = vpop.trf.xlu0
    %v111 = vpop.trf.xlu0
    %v112 = vpop.trf.xlu0
    %v113 = vpop.trf.xlu0
    %v114 = vpop.trf.xlu0
    %v115 = vpop.trf.xlu0
    %v116 = vpop.trf.xlu0
    %v117 = vpop.trf.xlu0
    %v118 = vpop.trf.xlu0
    %v119 = vpop.trf.xlu0
    %v120 = vpop.trf.xlu0
    %vm121 = vcmask 523264
    %v123 = vsel %vm121, %v105, 0
    %v126 = vsel %vm121, %v106, 0
    %128 = vmatpush.msra.mxu0 0.0
    %129 = vmatpush.msra.mxu0 0.0
    %130 = vmatpush.msra.mxu0 0.0
    %131 = vmatpush.msra.mxu0 0.0
    %132 = vmatpush.msra.mxu0 0.0
    %133 = vmatpush.msra.mxu0 0.0
    %134 = vmatpush.msra.mxu0 0.0
    %135 = vmatpush.msra.mxu0 0.0
    %v136 = vand.u32 %v88, 4294901760
    %137 = vmatpush.msra.mxu0 %v136
    %v138 = vand.u32 %v87, 4294901760
    %139 = vmatpush.msra.mxu0 %v138
    %v140 = vand.u32 %v86, 4294901760
    %141 = vmatpush.msra.mxu0 %v140
    %v142 = vand.u32 %v85, 4294901760
    %143 = vmatpush.msra.mxu0 %v142
    %v144 = vand.u32 %v84, 4294901760
    %145 = vmatpush.msra.mxu0 %v144
    %v146 = vand.u32 %v83, 4294901760
    %147 = vmatpush.msra.mxu0 %v146
    %v148 = vand.u32 %v82, 4294901760
    %149 = vmatpush.msra.mxu0 %v148
    %v150 = vand.u32 %v81, 4294901760
    %151 = vmatpush.msra.mxu0 %v150
    %v152 = vand.u32 %v123, 4294901760
    %v153 = vsub.f32 %v123, %v152
    %v154 = vand.u32 %v153, 4294901760
    %v155 = vsub.f32 %v153, %v154
    %v156 = vand.u32 %v155, 4294901760
    %157 = vmatmul.f32.gmra.mxu0 %v156
    %v158 = vpop.f32.mrf.mxu0
    %v159 = vadd.f32 0.0, %v158
    %v160 = vand.u32 %v126, 4294901760
    %v161 = vsub.f32 %v126, %v160
    %v162 = vand.u32 %v161, 4294901760
    %v163 = vsub.f32 %v161, %v162
    %v164 = vand.u32 %v163, 4294901760
    %165 = vmatmul.f32.gmra.mxu0 %v164
    %v166 = vpop.f32.mrf.mxu0
    %v167 = vadd.f32 0.0, %v166
    %168 = vdwg.mxu0
    %169 = vmatpush.msra.mxu0 0.0
    %170 = vmatpush.msra.mxu0 0.0
    %171 = vmatpush.msra.mxu0 0.0
    %172 = vmatpush.msra.mxu0 0.0
    %173 = vmatpush.msra.mxu0 0.0
    %174 = vmatpush.msra.mxu0 0.0
    %175 = vmatpush.msra.mxu0 0.0
    %176 = vmatpush.msra.mxu0 0.0
    %v177 = vand.u32 %v88, 4294901760
    %v178 = vsub.f32 %v88, %v177
    %v179 = vand.u32 %v178, 4294901760
    %v180 = vsub.f32 %v178, %v179
    %v181 = vand.u32 %v180, 4294901760
    %182 = vmatpush.msra.mxu0 %v181
    %v183 = vand.u32 %v87, 4294901760
    %v184 = vsub.f32 %v87, %v183
    %v185 = vand.u32 %v184, 4294901760
    %v186 = vsub.f32 %v184, %v185
    %v187 = vand.u32 %v186, 4294901760
    %188 = vmatpush.msra.mxu0 %v187
    %v189 = vand.u32 %v86, 4294901760
    %v190 = vsub.f32 %v86, %v189
    %v191 = vand.u32 %v190, 4294901760
    %v192 = vsub.f32 %v190, %v191
    %v193 = vand.u32 %v192, 4294901760
    %194 = vmatpush.msra.mxu0 %v193
    %v195 = vand.u32 %v85, 4294901760
    %v196 = vsub.f32 %v85, %v195
    %v197 = vand.u32 %v196, 4294901760
    %v198 = vsub.f32 %v196, %v197
    %v199 = vand.u32 %v198, 4294901760
    %200 = vmatpush.msra.mxu0 %v199
    %v201 = vand.u32 %v84, 4294901760
    %v202 = vsub.f32 %v84, %v201
    %v203 = vand.u32 %v202, 4294901760
    %v204 = vsub.f32 %v202, %v203
    %v205 = vand.u32 %v204, 4294901760
    %206 = vmatpush.msra.mxu0 %v205
    %v207 = vand.u32 %v83, 4294901760
    %v208 = vsub.f32 %v83, %v207
    %v209 = vand.u32 %v208, 4294901760
    %v210 = vsub.f32 %v208, %v209
    %v211 = vand.u32 %v210, 4294901760
    %212 = vmatpush.msra.mxu0 %v211
    %v213 = vand.u32 %v82, 4294901760
    %v214 = vsub.f32 %v82, %v213
    %v215 = vand.u32 %v214, 4294901760
    %v216 = vsub.f32 %v214, %v215
    %v217 = vand.u32 %v216, 4294901760
    %218 = vmatpush.msra.mxu0 %v217
    %v219 = vand.u32 %v81, 4294901760
    %v220 = vsub.f32 %v81, %v219
    %v221 = vand.u32 %v220, 4294901760
    %v222 = vsub.f32 %v220, %v221
    %v223 = vand.u32 %v222, 4294901760
    %224 = vmatpush.msra.mxu0 %v223
    %v225 = vand.u32 %v123, 4294901760
    %226 = vmatmul.f32.gmra.mxu0 %v225
    %v227 = vpop.f32.mrf.mxu0
    %v228 = vadd.f32 %v159, %v227
    %v229 = vand.u32 %v126, 4294901760
    %230 = vmatmul.f32.gmra.mxu0 %v229
    %v231 = vpop.f32.mrf.mxu0
    %v232 = vadd.f32 %v167, %v231
    %233 = vdwg.mxu0
    %234 = vmatpush.msra.mxu0 0.0
    %235 = vmatpush.msra.mxu0 0.0
    %236 = vmatpush.msra.mxu0 0.0
    %237 = vmatpush.msra.mxu0 0.0
    %238 = vmatpush.msra.mxu0 0.0
    %239 = vmatpush.msra.mxu0 0.0
    %240 = vmatpush.msra.mxu0 0.0
    %241 = vmatpush.msra.mxu0 0.0
    %v242 = vand.u32 %v88, 4294901760
    %v243 = vsub.f32 %v88, %v242
    %244 = vmatpush.msra.mxu0 %v243
    %v245 = vand.u32 %v87, 4294901760
    %v246 = vsub.f32 %v87, %v245
    %247 = vmatpush.msra.mxu0 %v246
    %v248 = vand.u32 %v86, 4294901760
    %v249 = vsub.f32 %v86, %v248
    %250 = vmatpush.msra.mxu0 %v249
    %v251 = vand.u32 %v85, 4294901760
    %v252 = vsub.f32 %v85, %v251
    %253 = vmatpush.msra.mxu0 %v252
    %v254 = vand.u32 %v84, 4294901760
    %v255 = vsub.f32 %v84, %v254
    %256 = vmatpush.msra.mxu0 %v255
    %v257 = vand.u32 %v83, 4294901760
    %v258 = vsub.f32 %v83, %v257
    %259 = vmatpush.msra.mxu0 %v258
    %v260 = vand.u32 %v82, 4294901760
    %v261 = vsub.f32 %v82, %v260
    %262 = vmatpush.msra.mxu0 %v261
    %v263 = vand.u32 %v81, 4294901760
    %v264 = vsub.f32 %v81, %v263
    %265 = vmatpush.msra.mxu0 %v264
    %v266 = vand.u32 %v123, 4294901760
    %v267 = vsub.f32 %v123, %v266
    %268 = vmatmul.f32.gmra.mxu0 %v267
    %v269 = vpop.f32.mrf.mxu0
    %v270 = vadd.f32 %v228, %v269
    %v271 = vand.u32 %v126, 4294901760
    %v272 = vsub.f32 %v126, %v271
    %273 = vmatmul.f32.gmra.mxu0 %v272
    %v274 = vpop.f32.mrf.mxu0
    %v275 = vadd.f32 %v232, %v274
    %276 = vdwg.mxu0
    %277 = vmatpush.msra.mxu0 0.0
    %278 = vmatpush.msra.mxu0 0.0
    %279 = vmatpush.msra.mxu0 0.0
    %280 = vmatpush.msra.mxu0 0.0
    %281 = vmatpush.msra.mxu0 0.0
    %282 = vmatpush.msra.mxu0 0.0
    %283 = vmatpush.msra.mxu0 0.0
    %284 = vmatpush.msra.mxu0 0.0
    %v285 = vand.u32 %v88, 4294901760
    %286 = vmatpush.msra.mxu0 %v285
    %v287 = vand.u32 %v87, 4294901760
    %288 = vmatpush.msra.mxu0 %v287
    %v289 = vand.u32 %v86, 4294901760
    %290 = vmatpush.msra.mxu0 %v289
    %v291 = vand.u32 %v85, 4294901760
    %292 = vmatpush.msra.mxu0 %v291
    %v293 = vand.u32 %v84, 4294901760
    %294 = vmatpush.msra.mxu0 %v293
    %v295 = vand.u32 %v83, 4294901760
    %296 = vmatpush.msra.mxu0 %v295
    %v297 = vand.u32 %v82, 4294901760
    %298 = vmatpush.msra.mxu0 %v297
    %v299 = vand.u32 %v81, 4294901760
    %300 = vmatpush.msra.mxu0 %v299
    %v301 = vand.u32 %v123, 4294901760
    %v302 = vsub.f32 %v123, %v301
    %v303 = vand.u32 %v302, 4294901760
    %304 = vmatmul.f32.gmra.mxu0 %v303
    %v305 = vpop.f32.mrf.mxu0
    %v306 = vadd.f32 %v270, %v305
    %v307 = vand.u32 %v126, 4294901760
    %v308 = vsub.f32 %v126, %v307
    %v309 = vand.u32 %v308, 4294901760
    %310 = vmatmul.f32.gmra.mxu0 %v309
    %v311 = vpop.f32.mrf.mxu0
    %v312 = vadd.f32 %v275, %v311
    %313 = vdwg.mxu0
    %314 = vmatpush.msra.mxu0 0.0
    %315 = vmatpush.msra.mxu0 0.0
    %316 = vmatpush.msra.mxu0 0.0
    %317 = vmatpush.msra.mxu0 0.0
    %318 = vmatpush.msra.mxu0 0.0
    %319 = vmatpush.msra.mxu0 0.0
    %320 = vmatpush.msra.mxu0 0.0
    %321 = vmatpush.msra.mxu0 0.0
    %v322 = vand.u32 %v88, 4294901760
    %v323 = vsub.f32 %v88, %v322
    %v324 = vand.u32 %v323, 4294901760
    %325 = vmatpush.msra.mxu0 %v324
    %v326 = vand.u32 %v87, 4294901760
    %v327 = vsub.f32 %v87, %v326
    %v328 = vand.u32 %v327, 4294901760
    %329 = vmatpush.msra.mxu0 %v328
    %v330 = vand.u32 %v86, 4294901760
    %v331 = vsub.f32 %v86, %v330
    %v332 = vand.u32 %v331, 4294901760
    %333 = vmatpush.msra.mxu0 %v332
    %v334 = vand.u32 %v85, 4294901760
    %v335 = vsub.f32 %v85, %v334
    %v336 = vand.u32 %v335, 4294901760
    %337 = vmatpush.msra.mxu0 %v336
    %v338 = vand.u32 %v84, 4294901760
    %v339 = vsub.f32 %v84, %v338
    %v340 = vand.u32 %v339, 4294901760
    %341 = vmatpush.msra.mxu0 %v340
    %v342 = vand.u32 %v83, 4294901760
    %v343 = vsub.f32 %v83, %v342
    %v344 = vand.u32 %v343, 4294901760
    %345 = vmatpush.msra.mxu0 %v344
    %v346 = vand.u32 %v82, 4294901760
    %v347 = vsub.f32 %v82, %v346
    %v348 = vand.u32 %v347, 4294901760
    %349 = vmatpush.msra.mxu0 %v348
    %v350 = vand.u32 %v81, 4294901760
    %v351 = vsub.f32 %v81, %v350
    %v352 = vand.u32 %v351, 4294901760
    %353 = vmatpush.msra.mxu0 %v352
    %v354 = vand.u32 %v123, 4294901760
    %355 = vmatmul.f32.gmra.mxu0 %v354
    %v356 = vpop.f32.mrf.mxu0
    %v357 = vadd.f32 %v306, %v356
    %v358 = vand.u32 %v126, 4294901760
    %359 = vmatmul.f32.gmra.mxu0 %v358
    %v360 = vpop.f32.mrf.mxu0
    %v361 = vadd.f32 %v312, %v360
    %362 = vdwg.mxu0
    %363 = vmatpush.msra.mxu0 0.0
    %364 = vmatpush.msra.mxu0 0.0
    %365 = vmatpush.msra.mxu0 0.0
    %366 = vmatpush.msra.mxu0 0.0
    %367 = vmatpush.msra.mxu0 0.0
    %368 = vmatpush.msra.mxu0 0.0
    %369 = vmatpush.msra.mxu0 0.0
    %370 = vmatpush.msra.mxu0 0.0
    %v371 = vand.u32 %v88, 4294901760
    %372 = vmatpush.msra.mxu0 %v371
    %v373 = vand.u32 %v87, 4294901760
    %374 = vmatpush.msra.mxu0 %v373
    %v375 = vand.u32 %v86, 4294901760
    %376 = vmatpush.msra.mxu0 %v375
    %v377 = vand.u32 %v85, 4294901760
    %378 = vmatpush.msra.mxu0 %v377
    %v379 = vand.u32 %v84, 4294901760
    %380 = vmatpush.msra.mxu0 %v379
    %v381 = vand.u32 %v83, 4294901760
    %382 = vmatpush.msra.mxu0 %v381
    %v383 = vand.u32 %v82, 4294901760
    %384 = vmatpush.msra.mxu0 %v383
    %v385 = vand.u32 %v81, 4294901760
    %386 = vmatpush.msra.mxu0 %v385
    %v387 = vand.u32 %v123, 4294901760
    %388 = vmatmul.f32.gmra.mxu0 %v387
    %v389 = vpop.f32.mrf.mxu0
    %v390 = vadd.f32 %v357, %v389
    %v391 = vand.u32 %v126, 4294901760
    %392 = vmatmul.f32.gmra.mxu0 %v391
    %v393 = vpop.f32.mrf.mxu0
    %v394 = vadd.f32 %v361, %v393
    %395 = vdwg.mxu0
    %396 = vst [vmem:[#allocation7] sm:$0xff] %v390
    %397 = vst [vmem:[#allocation7 + $0x8] sm:$0xff] %v394
    // Predicated region
    $region18: #{tpu_custom_call.1} parent=1 // pred_check
      _
    $region19: #{tpu_custom_call.1} parent=1 // pred_check_branch
      %399 = sbr.rel (0) target = $region21
    $region20: #{tpu_custom_call.1} parent=1 // pred_region
      %401 = vsyncadd [#allocation4], 0
      %s402 = sshll.u32 [#allocation7], 4
      %s403 = int_to_ptr.vmem [resolvable:$true] %s402
      %s404 = sshll.u32 %s2, 4
      %s405 = int_to_ptr.hbm [resolvable:$true] %s404
      %410 = dma.vmem_to_hbm [thread:$0]  %s403, 256, %s405, [#allocation4], 128, 128, 8
    $region21: #{tpu_custom_call.1} parent=1 // pred_fallthru
      _
    // Predicated region
    $region22: #{tpu_custom_call.1} parent=1 // pred_check
      _
    $region23: #{tpu_custom_call.1} parent=1 // pred_check_branch
      %412 = sbr.rel (0) target = $region25
    $region24: #{tpu_custom_call.1} parent=1 // pred_region
      %414 = dma.done [#allocation4], 256
    $region25: #{tpu_custom_call.1} parent=1 // pred_fallthru
      _
    %415 = vsyncpa [#allocation3], 1
    %416 = vsyncpa [#allocation6], 1
    %417 = vsyncpa [#allocation4], 1

</llo_original>
